<compile_context>
chip_gen: v7x
topology: tpu7x:2x2x1
jax: 0.10.0
libtpu: 0.0.40
codegen_flags: <defaults>
</compile_context>

<pallas_src>
import jax
import jax.numpy as jnp
from jax.experimental import pallas as pl
from jax.experimental.pallas import tpu as pltpu

BN_EPS = 1e-5


def dqn_kernel(x_ref, w1_ref, w2_ref, w3_ref, w4_ref, vec_ref, o_ref):
    # vec_ref rows: 0=g1, 1=be1, 2=g2, 3=be2, 4=g3, 5=be3, 6=b4(padded), 7=pad
    x = x_ref[...].astype(jnp.float32)
    v = vec_ref[...]

    def bn_relu(h, gamma, beta):
        # Training-mode BatchNorm1d (biased batch variance) fused with ReLU as
        # a single scale/shift + max over the (B, 128) activation.
        mean = jnp.mean(h, axis=0, keepdims=True)                    # XLU reduce
        var = jnp.mean(h * h, axis=0, keepdims=True) - mean * mean   # XLU reduce
        scale = gamma * jax.lax.rsqrt(var + BN_EPS)                  # EUP
        shift = beta - mean * scale
        return jnp.maximum(h * scale + shift, 0.0)

    # Linear biases b1/b2/b3 omitted: cancelled exactly by BN mean subtraction.
    h = jnp.dot(x, w1_ref[...], preferred_element_type=jnp.float32)
    h = bn_relu(h, v[0:1, :], v[1:2, :])

    h = jnp.dot(h, w2_ref[...], preferred_element_type=jnp.float32)
    h = bn_relu(h, v[2:3, :], v[3:4, :])

    h = jnp.dot(h, w3_ref[...], preferred_element_type=jnp.float32)
    h = bn_relu(h, v[4:5, :], v[5:6, :])

    # Final layer padded to 128 output columns -> lane-dense (B, 128) store.
    out = jnp.dot(h, w4_ref[...], preferred_element_type=jnp.float32) + v[6:7, :]
    o_ref[...] = out.astype(o_ref.dtype)


@jax.jit
def dqn_forward(x, packed):
    """Fused DQN forward. x: [B, 144] float32. Returns [B, 4] Q-values."""
    B = x.shape[0]
    args = (x, packed["w1"], packed["w2"], packed["w3"],
            packed["w4_pad"], packed["vec"])
    out_pad = pl.pallas_call(
        dqn_kernel,
        out_shape=jax.ShapeDtypeStruct((B, 128), jnp.float32),
        # No grid: every operand is a single whole-array VMEM block (net fits
        # easily; BatchNorm needs the full batch resident anyway).
        in_specs=[pl.BlockSpec(memory_space=pltpu.MemorySpace.VMEM)
                  for _ in args],
        out_specs=pl.BlockSpec(memory_space=pltpu.MemorySpace.VMEM),
    )(*args)
    # Only the first 4 output lanes are real Q-values; the rest are zero pad.
    return out_pad[:, :4]


def init_params(key):
    """PyTorch-default-style init (U(-1/sqrt(fan_in), 1/sqrt(fan_in)))."""
    dims = [(144, 128), (128, 128), (128, 128), (128, 4)]
    params = {}
    keys = jax.random.split(key, 2 * len(dims))
    for i, (fan_in, fan_out) in enumerate(dims):
        bound = 1.0 / jnp.sqrt(jnp.float32(fan_in))
        params[f"w{i + 1}"] = jax.random.uniform(
            keys[2 * i], (fan_in, fan_out), jnp.float32, minval=-bound, maxval=bound)
        params[f"b{i + 1}"] = jax.random.uniform(
            keys[2 * i + 1], (1, fan_out), jnp.float32, minval=-bound, maxval=bound)
    for i in (1, 2, 3):
        params[f"g{i}"] = jnp.ones((1, 128), jnp.float32)    # BN gamma
        params[f"be{i}"] = jnp.zeros((1, 128), jnp.float32)  # BN beta
    return params


def pack_params(params):
    """Pack PyTorch-style params into the 6 kernel operands."""
    w4_pad = jnp.zeros((128, 128), jnp.float32).at[:, :4].set(params["w4"])
    b4_pad = jnp.zeros((128,), jnp.float32).at[:4].set(params["b4"][0])
    vec = jnp.stack(
        [params["g1"][0], params["be1"][0],
         params["g2"][0], params["be2"][0],
         params["g3"][0], params["be3"][0],
         b4_pad,
         jnp.zeros((128,), jnp.float32)],
        axis=0)  # (8, 128) f32 slab
    return {"w1": params["w1"], "w2": params["w2"], "w3": params["w3"],
            "w4_pad": w4_pad, "vec": vec}


def dqn_reference(x, params):
    """Pure-JAX reference mirroring the PyTorch forward exactly
    (with explicit b1/b2/b3, verifying the BN bias-cancellation)."""
    def bn_relu(h, gamma, beta):
        mean = jnp.mean(h, axis=0, keepdims=True)
        var = jnp.mean((h - mean) ** 2, axis=0, keepdims=True)
        h_hat = (h - mean) * jax.lax.rsqrt(var + BN_EPS)
        return jnp.maximum(gamma * h_hat + beta, 0.0)

    h = bn_relu(x @ params["w1"] + params["b1"], params["g1"], params["be1"])
    h = bn_relu(h @ params["w2"] + params["b2"], params["g2"], params["be2"])
    h = bn_relu(h @ params["w3"] + params["b3"], params["g3"], params["be3"])
    return h @ params["w4"] + params["b4"]


if __name__ == "__main__":
    key = jax.random.PRNGKey(0)
    k_params, k_x = jax.random.split(key)
    params = init_params(k_params)
    packed = pack_params(params)

    B = 8  # >1 required for training-mode BatchNorm statistics
    x = jax.random.normal(k_x, (B, 144), jnp.float32)

    out = dqn_forward(x, packed)
    out = jax.block_until_ready(out)

    ref = dqn_reference(x, params)
    assert out.shape == (B, 4)
    assert jnp.allclose(out, ref, atol=1e-4, rtol=1e-4), "mismatch vs reference"

    print("KERNEL_OK")
</pallas_src>

<mosaic_0001>
module attributes {stable_mosaic.version = 11 : i64} {
  func.func @dqn_kernel(%arg0: memref<8x144xf32, #tpu.memory_space<vmem>>, %arg1: memref<144x128xf32, #tpu.memory_space<vmem>>, %arg2: memref<128x128xf32, #tpu.memory_space<vmem>>, %arg3: memref<128x128xf32, #tpu.memory_space<vmem>>, %arg4: memref<128x128xf32, #tpu.memory_space<vmem>>, %arg5: memref<8x128xf32, #tpu.memory_space<vmem>>, %arg6: memref<8x128xf32, #tpu.memory_space<vmem>>) attributes {dimension_semantics = [], scalar_prefetch = 0 : i64, scratch_operands = 0 : i64, tpu.core_type = #tpu.core_type<tc>} {
    %c0 = arith.constant 0 : index
    %c0_0 = arith.constant 0 : index
    %0 = vector.load %arg0[%c0, %c0_0] : memref<8x144xf32, #tpu.memory_space<vmem>>, vector<8x144xf32>
    %c0_1 = arith.constant 0 : index
    %c0_2 = arith.constant 0 : index
    %1 = vector.load %arg5[%c0_1, %c0_2] : memref<8x128xf32, #tpu.memory_space<vmem>>, vector<8x128xf32>
    %c0_3 = arith.constant 0 : index
    %c0_4 = arith.constant 0 : index
    %2 = vector.load %arg1[%c0_3, %c0_4] : memref<144x128xf32, #tpu.memory_space<vmem>>, vector<144x128xf32>
    %cst = arith.constant dense<0.000000e+00> : vector<8x128xf32>
    %3 = tpu.matmul %0, %2, %cst {dimension_numbers = #tpu.dot_dimension_numbers<[1], [0], [0], [1], [0, 0, 1, 1], [], []>} : vector<8x144xf32>, vector<144x128xf32>, vector<8x128xf32> -> vector<8x128xf32>
    %4 = vector.extract_strided_slice %1 {offsets = [0, 0], sizes = [1, 128], strides = [1, 1]} : vector<8x128xf32> to vector<1x128xf32>
    %5 = vector.extract_strided_slice %1 {offsets = [1, 0], sizes = [1, 128], strides = [1, 1]} : vector<8x128xf32> to vector<1x128xf32>
    %cst_5 = arith.constant dense<0.000000e+00> : vector<128xf32>
    %6 = vector.multi_reduction <add>, %3, %cst_5 [0] : vector<8x128xf32> to vector<128xf32>
    %7 = vector.shape_cast %6 : vector<128xf32> to vector<1x128xf32>
    %cst_6 = arith.constant 8.000000e+00 : f32
    %8 = vector.broadcast %cst_6 : f32 to vector<1x128xf32>
    %9 = arith.divf %7, %8 : vector<1x128xf32>
    %10 = arith.mulf %3, %3 : vector<8x128xf32>
    %cst_7 = arith.constant dense<0.000000e+00> : vector<128xf32>
    %11 = vector.multi_reduction <add>, %10, %cst_7 [0] : vector<8x128xf32> to vector<128xf32>
    %12 = vector.shape_cast %11 : vector<128xf32> to vector<1x128xf32>
    %cst_8 = arith.constant 8.000000e+00 : f32
    %13 = vector.broadcast %cst_8 : f32 to vector<1x128xf32>
    %14 = arith.divf %12, %13 : vector<1x128xf32>
    %15 = arith.mulf %9, %9 : vector<1x128xf32>
    %16 = arith.subf %14, %15 : vector<1x128xf32>
    %cst_9 = arith.constant 9.99999974E-6 : f32
    %17 = vector.broadcast %cst_9 : f32 to vector<1x128xf32>
    %18 = arith.addf %16, %17 : vector<1x128xf32>
    %19 = math.rsqrt %18 : vector<1x128xf32>
    %20 = arith.mulf %4, %19 : vector<1x128xf32>
    %21 = arith.mulf %9, %20 : vector<1x128xf32>
    %22 = arith.subf %5, %21 : vector<1x128xf32>
    %23 = vector.broadcast %20 : vector<1x128xf32> to vector<8x128xf32>
    %24 = arith.mulf %3, %23 : vector<8x128xf32>
    %25 = vector.broadcast %22 : vector<1x128xf32> to vector<8x128xf32>
    %26 = arith.addf %24, %25 : vector<8x128xf32>
    %cst_10 = arith.constant 0.000000e+00 : f32
    %27 = vector.broadcast %cst_10 : f32 to vector<8x128xf32>
    %28 = arith.maximumf %26, %27 : vector<8x128xf32>
    %c0_11 = arith.constant 0 : index
    %c0_12 = arith.constant 0 : index
    %29 = vector.load %arg2[%c0_11, %c0_12] : memref<128x128xf32, #tpu.memory_space<vmem>>, vector<128x128xf32>
    %cst_13 = arith.constant dense<0.000000e+00> : vector<8x128xf32>
    %30 = tpu.matmul %28, %29, %cst_13 {dimension_numbers = #tpu.dot_dimension_numbers<[1], [0], [0], [1], [0, 0, 1, 1], [], []>} : vector<8x128xf32>, vector<128x128xf32>, vector<8x128xf32> -> vector<8x128xf32>
    %31 = vector.extract_strided_slice %1 {offsets = [2, 0], sizes = [1, 128], strides = [1, 1]} : vector<8x128xf32> to vector<1x128xf32>
    %32 = vector.extract_strided_slice %1 {offsets = [3, 0], sizes = [1, 128], strides = [1, 1]} : vector<8x128xf32> to vector<1x128xf32>
    %cst_14 = arith.constant dense<0.000000e+00> : vector<128xf32>
    %33 = vector.multi_reduction <add>, %30, %cst_14 [0] : vector<8x128xf32> to vector<128xf32>
    %34 = vector.shape_cast %33 : vector<128xf32> to vector<1x128xf32>
    %cst_15 = arith.constant 8.000000e+00 : f32
    %35 = vector.broadcast %cst_15 : f32 to vector<1x128xf32>
    %36 = arith.divf %34, %35 : vector<1x128xf32>
    %37 = arith.mulf %30, %30 : vector<8x128xf32>
    %cst_16 = arith.constant dense<0.000000e+00> : vector<128xf32>
    %38 = vector.multi_reduction <add>, %37, %cst_16 [0] : vector<8x128xf32> to vector<128xf32>
    %39 = vector.shape_cast %38 : vector<128xf32> to vector<1x128xf32>
    %cst_17 = arith.constant 8.000000e+00 : f32
    %40 = vector.broadcast %cst_17 : f32 to vector<1x128xf32>
    %41 = arith.divf %39, %40 : vector<1x128xf32>
    %42 = arith.mulf %36, %36 : vector<1x128xf32>
    %43 = arith.subf %41, %42 : vector<1x128xf32>
    %cst_18 = arith.constant 9.99999974E-6 : f32
    %44 = vector.broadcast %cst_18 : f32 to vector<1x128xf32>
    %45 = arith.addf %43, %44 : vector<1x128xf32>
    %46 = math.rsqrt %45 : vector<1x128xf32>
    %47 = arith.mulf %31, %46 : vector<1x128xf32>
    %48 = arith.mulf %36, %47 : vector<1x128xf32>
    %49 = arith.subf %32, %48 : vector<1x128xf32>
    %50 = vector.broadcast %47 : vector<1x128xf32> to vector<8x128xf32>
    %51 = arith.mulf %30, %50 : vector<8x128xf32>
    %52 = vector.broadcast %49 : vector<1x128xf32> to vector<8x128xf32>
    %53 = arith.addf %51, %52 : vector<8x128xf32>
    %cst_19 = arith.constant 0.000000e+00 : f32
    %54 = vector.broadcast %cst_19 : f32 to vector<8x128xf32>
    %55 = arith.maximumf %53, %54 : vector<8x128xf32>
    %c0_20 = arith.constant 0 : index
    %c0_21 = arith.constant 0 : index
    %56 = vector.load %arg3[%c0_20, %c0_21] : memref<128x128xf32, #tpu.memory_space<vmem>>, vector<128x128xf32>
    %cst_22 = arith.constant dense<0.000000e+00> : vector<8x128xf32>
    %57 = tpu.matmul %55, %56, %cst_22 {dimension_numbers = #tpu.dot_dimension_numbers<[1], [0], [0], [1], [0, 0, 1, 1], [], []>} : vector<8x128xf32>, vector<128x128xf32>, vector<8x128xf32> -> vector<8x128xf32>
    %58 = vector.extract_strided_slice %1 {offsets = [4, 0], sizes = [1, 128], strides = [1, 1]} : vector<8x128xf32> to vector<1x128xf32>
    %59 = vector.extract_strided_slice %1 {offsets = [5, 0], sizes = [1, 128], strides = [1, 1]} : vector<8x128xf32> to vector<1x128xf32>
    %cst_23 = arith.constant dense<0.000000e+00> : vector<128xf32>
    %60 = vector.multi_reduction <add>, %57, %cst_23 [0] : vector<8x128xf32> to vector<128xf32>
    %61 = vector.shape_cast %60 : vector<128xf32> to vector<1x128xf32>
    %cst_24 = arith.constant 8.000000e+00 : f32
    %62 = vector.broadcast %cst_24 : f32 to vector<1x128xf32>
    %63 = arith.divf %61, %62 : vector<1x128xf32>
    %64 = arith.mulf %57, %57 : vector<8x128xf32>
    %cst_25 = arith.constant dense<0.000000e+00> : vector<128xf32>
    %65 = vector.multi_reduction <add>, %64, %cst_25 [0] : vector<8x128xf32> to vector<128xf32>
    %66 = vector.shape_cast %65 : vector<128xf32> to vector<1x128xf32>
    %cst_26 = arith.constant 8.000000e+00 : f32
    %67 = vector.broadcast %cst_26 : f32 to vector<1x128xf32>
    %68 = arith.divf %66, %67 : vector<1x128xf32>
    %69 = arith.mulf %63, %63 : vector<1x128xf32>
    %70 = arith.subf %68, %69 : vector<1x128xf32>
    %cst_27 = arith.constant 9.99999974E-6 : f32
    %71 = vector.broadcast %cst_27 : f32 to vector<1x128xf32>
    %72 = arith.addf %70, %71 : vector<1x128xf32>
    %73 = math.rsqrt %72 : vector<1x128xf32>
    %74 = arith.mulf %58, %73 : vector<1x128xf32>
    %75 = arith.mulf %63, %74 : vector<1x128xf32>
    %76 = arith.subf %59, %75 : vector<1x128xf32>
    %77 = vector.broadcast %74 : vector<1x128xf32> to vector<8x128xf32>
    %78 = arith.mulf %57, %77 : vector<8x128xf32>
    %79 = vector.broadcast %76 : vector<1x128xf32> to vector<8x128xf32>
    %80 = arith.addf %78, %79 : vector<8x128xf32>
    %cst_28 = arith.constant 0.000000e+00 : f32
    %81 = vector.broadcast %cst_28 : f32 to vector<8x128xf32>
    %82 = arith.maximumf %80, %81 : vector<8x128xf32>
    %c0_29 = arith.constant 0 : index
    %c0_30 = arith.constant 0 : index
    %83 = vector.load %arg4[%c0_29, %c0_30] : memref<128x128xf32, #tpu.memory_space<vmem>>, vector<128x128xf32>
    %cst_31 = arith.constant dense<0.000000e+00> : vector<8x128xf32>
    %84 = tpu.matmul %82, %83, %cst_31 {dimension_numbers = #tpu.dot_dimension_numbers<[1], [0], [0], [1], [0, 0, 1, 1], [], []>} : vector<8x128xf32>, vector<128x128xf32>, vector<8x128xf32> -> vector<8x128xf32>
    %85 = vector.extract_strided_slice %1 {offsets = [6, 0], sizes = [1, 128], strides = [1, 1]} : vector<8x128xf32> to vector<1x128xf32>
    %86 = vector.broadcast %85 : vector<1x128xf32> to vector<8x128xf32>
    %87 = arith.addf %84, %86 : vector<8x128xf32>
    %c0_32 = arith.constant 0 : index
    %c0_33 = arith.constant 0 : index
    %88 = vector.load %arg6[%c0_32, %c0_33] : memref<8x128xf32, #tpu.memory_space<vmem>>, vector<8x128xf32>
    tpu.vector_store %arg6[%c0_32, %c0_33], %87 {strides = array<i32>} : memref<8x128xf32, #tpu.memory_space<vmem>>, vector<8x128xf32>,
    return
  }
}

</mosaic_0001>

<llo_original>
// kernel: dqn_forward.1
$region0: #{dqn_forward.1}
  #allocation0 [shape = 'u32[]', space=smem, size = 0x4, offset = 0x4, fixed_abs, tag = 'smem constant byte address 0x4 - core index']
  #allocation1 [shape = 'u32[144,128]{1,0:T(1,128)}', space=vmem, size = 0x12000, scoped, tag = 'internal scratch']
  %s0 = inlined_call_operand.hbm [shape: f32[8,144], index: 0, kind: input, shape index: {}]
  %s1 = inlined_call_operand.hbm [shape: f32[144,128], index: 1, kind: input, shape index: {}]
  %s2 = inlined_call_operand.hbm [shape: f32[128,128], index: 2, kind: input, shape index: {}]
  %s3 = inlined_call_operand.hbm [shape: f32[128,128], index: 3, kind: input, shape index: {}]
  %s4 = inlined_call_operand.hbm [shape: f32[128,128], index: 4, kind: input, shape index: {}]
  %s5 = inlined_call_operand.hbm [shape: f32[8,128], index: 5, kind: input, shape index: {}]
  %s6 = inlined_call_operand.vmem [shape: f32[8,128], index: 6, kind: output, shape index: {}]
  %s7 = sld [smem:[#allocation0]]
  $region58: #{dqn_forward.1} parent=0
    _
  %s9 = ssub.s32 1, %s7
  %s10 = scalar_select 0, %s9, %s7
  $region1: #{dqn_forward.1} parent=0
    #allocation2 [shape = 'u8[8192]{0}', space=vmem, size = 0x2000, scoped, tag = 'input window, operand 0, single buffered']
    #allocation3 [shape = 's32[1]{0}', space=sflag, size = 0x4, scoped, tag = 'scoped memory for dqn_forward.1']
    #allocation4 [shape = 'u8[73728]{0}', space=vmem, size = 0x12000, scoped, tag = 'input window, operand 1, single buffered']
    #allocation5 [shape = 's32[1]{0}', space=sflag, size = 0x4, scoped, tag = 'scoped memory for dqn_forward.1']
    #allocation6 [shape = 'u8[65536]{0}', space=vmem, size = 0x10000, scoped, tag = 'input window, operand 2, single buffered']
    #allocation7 [shape = 'u8[65536]{0}', space=vmem, size = 0x10000, scoped, tag = 'input window, operand 3, single buffered']
    #allocation8 [shape = 's32[1]{0}', space=sflag, size = 0x4, scoped, tag = 'scoped memory for dqn_forward.1']
    #allocation9 [shape = 'u8[65536]{0}', space=vmem, size = 0x10000, scoped, tag = 'input window, operand 4, single buffered']
    #allocation10 [shape = 'u8[4096]{0}', space=vmem, size = 0x1000, scoped, tag = 'input window, operand 5, single buffered']
    #allocation11 [shape = 's32[1]{0}', space=sflag, size = 0x4, scoped, tag = 'scoped memory for dqn_forward.1']
    %11 = vsyncpa [#allocation3], 0
    %12 = vsyncpa [#allocation5], 0
    %13 = vsyncpa [#allocation8], 0
    %14 = vsyncpa [#allocation11], 0
    // Predicated region
    $region2: #{dqn_forward.1} parent=1 // pred_check
      _
    $region3: #{dqn_forward.1} parent=1 // pred_check_branch
      %16 = sbr.rel (0) target = $region5
    $region4: #{dqn_forward.1} parent=1 // pred_region
      %s18 = ssub.s32 256, 256
      %19 = vsyncadd [#allocation3], %s18
      %s21 = sshll.u32 [#allocation2], 4
      %s22 = int_to_ptr.vmem [resolvable:$true] %s21
      %24 = dma.hbm_to_vmem [thread:$0]  %s0, 256, %s22, [#allocation3]
    $region5: #{dqn_forward.1} parent=1 // pred_fallthru
      _
    // Predicated region
    $region6: #{dqn_forward.1} parent=1 // pred_check
      _
    $region7: #{dqn_forward.1} parent=1 // pred_check_branch
      %26 = sbr.rel (0) target = $region9
    $region8: #{dqn_forward.1} parent=1 // pred_region
      %s28 = ssub.s32 2304, 2304
      %29 = vsyncadd [#allocation5], %s28
      %s30 = sshll.u32 [#allocation4], 4
      %s31 = int_to_ptr.vmem [resolvable:$true] %s30
      %36 = dma.hbm_to_vmem [thread:$0]  %s1, 2304, %s31, [#allocation5], 128, 128, 8
    $region9: #{dqn_forward.1} parent=1 // pred_fallthru
      _
    // Predicated region
    $region10: #{dqn_forward.1} parent=1 // pred_check
      _
    $region11: #{dqn_forward.1} parent=1 // pred_check_branch
      %38 = sbr.rel (0) target = $region13
    $region12: #{dqn_forward.1} parent=1 // pred_region
      %s40 = ssub.s32 2048, 2048
      %41 = vsyncadd [#allocation5], %s40
      %s42 = sshll.u32 [#allocation6], 4
      %s43 = int_to_ptr.vmem [resolvable:$true] %s42
      %48 = dma.hbm_to_vmem [thread:$0]  %s2, 2048, %s43, [#allocation5], 128, 128, 8
    $region13: #{dqn_forward.1} parent=1 // pred_fallthru
      _
    // Predicated region
    $region14: #{dqn_forward.1} parent=1 // pred_check
      _
    $region15: #{dqn_forward.1} parent=1 // pred_check_branch
      %50 = sbr.rel (0) target = $region17
    $region16: #{dqn_forward.1} parent=1 // pred_region
      %s52 = ssub.s32 2048, 2048
      %53 = vsyncadd [#allocation8], %s52
      %s54 = sshll.u32 [#allocation7], 4
      %s55 = int_to_ptr.vmem [resolvable:$true] %s54
      %60 = dma.hbm_to_vmem [thread:$0]  %s3, 2048, %s55, [#allocation8], 128, 128, 8
    $region17: #{dqn_forward.1} parent=1 // pred_fallthru
      _
    // Predicated region
    $region18: #{dqn_forward.1} parent=1 // pred_check
      _
    $region19: #{dqn_forward.1} parent=1 // pred_check_branch
      %62 = sbr.rel (0) target = $region21
    $region20: #{dqn_forward.1} parent=1 // pred_region
      %s64 = ssub.s32 2048, 2048
      %65 = vsyncadd [#allocation8], %s64
      %s66 = sshll.u32 [#allocation9], 4
      %s67 = int_to_ptr.vmem [resolvable:$true] %s66
      %72 = dma.hbm_to_vmem [thread:$0]  %s4, 2048, %s67, [#allocation8], 128, 128, 8
    $region21: #{dqn_forward.1} parent=1 // pred_fallthru
      _
    // Predicated region
    $region22: #{dqn_forward.1} parent=1 // pred_check
      _
    $region23: #{dqn_forward.1} parent=1 // pred_check_branch
      %74 = sbr.rel (0) target = $region25
    $region24: #{dqn_forward.1} parent=1 // pred_region
      %s76 = ssub.s32 128, 128
      %77 = vsyncadd [#allocation11], %s76
      %s79 = sshll.u32 [#allocation10], 4
      %s80 = int_to_ptr.vmem [resolvable:$true] %s79
      %82 = dma.hbm_to_vmem [thread:$0]  %s5, 128, %s80, [#allocation11]
    $region25: #{dqn_forward.1} parent=1 // pred_fallthru
      _
    // Predicated region
    $region26: #{dqn_forward.1} parent=1 // pred_check
      _
    $region27: #{dqn_forward.1} parent=1 // pred_check_branch
      %84 = sbr.rel (0) target = $region29
    $region28: #{dqn_forward.1} parent=1 // pred_region
      %85 = dma.done [#allocation3], 256
    $region29: #{dqn_forward.1} parent=1 // pred_fallthru
      _
    // Predicated region
    $region30: #{dqn_forward.1} parent=1 // pred_check
      _
    $region31: #{dqn_forward.1} parent=1 // pred_check_branch
      %87 = sbr.rel (0) target = $region33
    $region32: #{dqn_forward.1} parent=1 // pred_region
      %88 = dma.done [#allocation5], 2304
    $region33: #{dqn_forward.1} parent=1 // pred_fallthru
      _
    // Predicated region
    $region34: #{dqn_forward.1} parent=1 // pred_check
      _
    $region35: #{dqn_forward.1} parent=1 // pred_check_branch
      %90 = sbr.rel (0) target = $region37
    $region36: #{dqn_forward.1} parent=1 // pred_region
      %91 = dma.done [#allocation5], 2048
    $region37: #{dqn_forward.1} parent=1 // pred_fallthru
      _
    // Predicated region
    $region38: #{dqn_forward.1} parent=1 // pred_check
      _
    $region39: #{dqn_forward.1} parent=1 // pred_check_branch
      %93 = sbr.rel (0) target = $region41
    $region40: #{dqn_forward.1} parent=1 // pred_region
      %94 = dma.done [#allocation8], 2048
    $region41: #{dqn_forward.1} parent=1 // pred_fallthru
      _
    // Predicated region
    $region42: #{dqn_forward.1} parent=1 // pred_check
      _
    $region43: #{dqn_forward.1} parent=1 // pred_check_branch
      %96 = sbr.rel (0) target = $region45
    $region44: #{dqn_forward.1} parent=1 // pred_region
      %97 = dma.done [#allocation8], 2048
    $region45: #{dqn_forward.1} parent=1 // pred_fallthru
      _
    // Predicated region
    $region46: #{dqn_forward.1} parent=1 // pred_check
      _
    $region47: #{dqn_forward.1} parent=1 // pred_check_branch
      %99 = sbr.rel (0) target = $region49
    $region48: #{dqn_forward.1} parent=1 // pred_region
      %100 = dma.done [#allocation11], 128
    $region49: #{dqn_forward.1} parent=1 // pred_fallthru
      _
    %v101 = vld [vmem:[#allocation2] sm:$0xff]
    %v102 = vld [vmem:[#allocation2 + $0x8] sm:$0xff]
    %v103 = vld [vmem:[#allocation10] sm:$0xff]
    %v104 = vld [vmem:[#allocation4] sm:$0xff]
    %v105 = vld [vmem:[#allocation4 + $0x8] sm:$0xff]
    %v106 = vld [vmem:[#allocation4 + $0x10] sm:$0xff]
    %v107 = vld [vmem:[#allocation4 + $0x18] sm:$0xff]
    %v108 = vld [vmem:[#allocation4 + $0x20] sm:$0xff]
    %v109 = vld [vmem:[#allocation4 + $0x28] sm:$0xff]
    %v110 = vld [vmem:[#allocation4 + $0x30] sm:$0xff]
    %v111 = vld [vmem:[#allocation4 + $0x38] sm:$0xff]
    %v112 = vld [vmem:[#allocation4 + $0x40] sm:$0xff]
    %v113 = vld [vmem:[#allocation4 + $0x48] sm:$0xff]
    %v114 = vld [vmem:[#allocation4 + $0x50] sm:$0xff]
    %v115 = vld [vmem:[#allocation4 + $0x58] sm:$0xff]
    %v116 = vld [vmem:[#allocation4 + $0x60] sm:$0xff]
    %v117 = vld [vmem:[#allocation4 + $0x68] sm:$0xff]
    %v118 = vld [vmem:[#allocation4 + $0x70] sm:$0xff]
    %v119 = vld [vmem:[#allocation4 + $0x78] sm:$0xff]
    %v120 = vld [vmem:[#allocation4 + $0x80] sm:$0xff]
    %v121 = vld [vmem:[#allocation4 + $0x88] sm:$0xff]
    %vm122 = vcmask 130048
    %v124 = vsel %vm122, %v102, 0
    %126 = vmatprep.subr.mxu0 0.0
    %127 = vmatpush1.msra.mxu0 %v104
    %128 = vmatprep.subr.mxu0 0.0
    %129 = vmatpush1.msra.mxu0 %v105
    %130 = vmatprep.subr.mxu0 0.0
    %131 = vmatpush1.msra.mxu0 %v106
    %132 = vmatprep.subr.mxu0 0.0
    %133 = vmatpush1.msra.mxu0 %v107
    %134 = vmatprep.subr.mxu0 0.0
    %135 = vmatpush1.msra.mxu0 %v108
    %136 = vmatprep.subr.mxu0 0.0
    %137 = vmatpush1.msra.mxu0 %v109
    %138 = vmatprep.subr.mxu0 0.0
    %139 = vmatpush1.msra.mxu0 %v110
    %140 = vmatprep.subr.mxu0 0.0
    %141 = vmatpush1.msra.mxu0 %v111
    %142 = vmatprep.subr.mxu0 0.0
    %143 = vmatpush1.msra.mxu0 %v112
    %144 = vmatprep.subr.mxu0 0.0
    %145 = vmatpush1.msra.mxu0 %v113
    %146 = vmatprep.subr.mxu0 0.0
    %147 = vmatpush1.msra.mxu0 %v114
    %148 = vmatprep.subr.mxu0 0.0
    %149 = vmatpush1.msra.mxu0 %v115
    %150 = vmatprep.subr.mxu0 0.0
    %151 = vmatpush1.msra.mxu0 %v116
    %152 = vmatprep.subr.mxu0 0.0
    %153 = vmatpush1.msra.mxu0 %v117
    %154 = vmatprep.subr.mxu0 0.0
    %155 = vmatpush1.msra.mxu0 %v118
    %156 = vmatprep.subr.mxu0 0.0
    %157 = vmatpush1.msra.mxu0 %v119
    %158 = vmatprep.subr.mxu0 0.0
    %159 = vmatpush1.msra.mxu0 %v120
    %160 = vmatprep.subr.mxu0 0.0
    %161 = vmatpush1.msra.mxu0 %v121
    %162 = vmatprep.subr.mxu0 0.0
    %163 = vmatpush1.msra.mxu0 0.0
    %164 = vmatprep.subr.mxu0 0.0
    %165 = vmatpush1.msra.mxu0 0.0
    %166 = vmatprep.subr.mxu0 0.0
    %167 = vmatpush1.msra.mxu0 0.0
    %168 = vmatprep.subr.mxu0 0.0
    %169 = vmatpush1.msra.mxu0 0.0
    %170 = vmatprep.subr.mxu0 0.0
    %171 = vmatpush1.msra.mxu0 0.0
    %172 = vmatprep.subr.mxu0 0.0
    %173 = vmatpush1.msra.mxu0 0.0
    %174 = vmatprep.subr.mxu0 0.0
    %175 = vmatpush1.msra.mxu0 0.0
    %176 = vmatprep.subr.mxu0 0.0
    %177 = vmatpush1.msra.mxu0 0.0
    %178 = vmatprep.subr.mxu0 0.0
    %179 = vmatpush1.msra.mxu0 0.0
    %180 = vmatprep.subr.mxu0 0.0
    %181 = vmatpush1.msra.mxu0 0.0
    %182 = vmatprep.subr.mxu0 0.0
    %183 = vmatpush1.msra.mxu0 0.0
    %184 = vmatprep.subr.mxu0 0.0
    %185 = vmatpush1.msra.mxu0 0.0
    %186 = vmatprep.subr.mxu0 0.0
    %187 = vmatpush1.msra.mxu0 0.0
    %188 = vmatprep.subr.mxu0 0.0
    %189 = vmatpush1.msra.mxu0 0.0
    %190 = vmatprep.mubr.f32.mxu0 %v124
    %191 = vmatmul.mubr.f32.gmra.mrb[0].mxu0 %v101
    %v192 = vpop.f32.mrb[0].mxu0
    %v193 = vadd.f32 0.0, %v192
    %v194 = vpop.f32.mrb[0].mxu0
    %195 = vdwg.mxu0
    %v196 = vrot.slane %v193, 4
    %v197 = vadd.f32 %v193, %v196
    %v198 = vrot.slane %v197, 2
    %v199 = vadd.f32 %v197, %v198
    %v200 = vrot.slane %v199, 1
    %v201 = vadd.f32 %v199, %v200
    %v202 = vrcp.pop 8.0
    %v203 = vmul.f32 %v201, %v202
    %v204 = vmul.f32 %v193, %v193
    %v205 = vrot.slane %v204, 4
    %v206 = vadd.f32 %v204, %v205
    %v207 = vrot.slane %v206, 2
    %v208 = vadd.f32 %v206, %v207
    %v209 = vrot.slane %v208, 1
    %v210 = vadd.f32 %v208, %v209
    %v211 = vmul.f32 %v210, %v202
    %v212 = vmul.f32 %v203, %v203
    %v213 = vsub.f32 %v211, %v212
    %v214 = vadd.f32 %v213, 1e-05
    %v215 = vrsqrt.pop %v214
    %v216 = vmul.f32 %v103, %v215
    %v217 = vmul.f32 %v203, %v216
    %v219 = vrot.slane %v217, 7
    %v221 = vsub.f32 %v103, %v219
    %v222 = vlaneseq
    %v223 = vshrl.u32 %v222, 7
    %v224 = vsub.s32 0, %v223
    %v225 = vrot.slane %v216, %v224
    %v226 = vmul.f32 %v193, %v225
    %v227 = vlaneseq
    %v228 = vshrl.u32 %v227, 7
    %v229 = vsub.s32 1, %v228
    %v230 = vrot.slane %v221, %v229
    %v231 = vadd.f32 %v226, %v230
    %v232 = vmax.f32 %v231, 0.0
    %v233 = vld [vmem:[#allocation6] sm:$0xff]
    %v234 = vld [vmem:[#allocation6 + $0x8] sm:$0xff]
    %v235 = vld [vmem:[#allocation6 + $0x10] sm:$0xff]
    %v236 = vld [vmem:[#allocation6 + $0x18] sm:$0xff]
    %v237 = vld [vmem:[#allocation6 + $0x20] sm:$0xff]
    %v238 = vld [vmem:[#allocation6 + $0x28] sm:$0xff]
    %v239 = vld [vmem:[#allocation6 + $0x30] sm:$0xff]
    %v240 = vld [vmem:[#allocation6 + $0x38] sm:$0xff]
    %v241 = vld [vmem:[#allocation6 + $0x40] sm:$0xff]
    %v242 = vld [vmem:[#allocation6 + $0x48] sm:$0xff]
    %v243 = vld [vmem:[#allocation6 + $0x50] sm:$0xff]
    %v244 = vld [vmem:[#allocation6 + $0x58] sm:$0xff]
    %v245 = vld [vmem:[#allocation6 + $0x60] sm:$0xff]
    %v246 = vld [vmem:[#allocation6 + $0x68] sm:$0xff]
    %v247 = vld [vmem:[#allocation6 + $0x70] sm:$0xff]
    %v248 = vld [vmem:[#allocation6 + $0x78] sm:$0xff]
    %249 = vmatprep.subr.mxu0 0.0
    %250 = vmatpush1.msra.mxu0 %v233
    %251 = vmatprep.subr.mxu0 0.0
    %252 = vmatpush1.msra.mxu0 %v234
    %253 = vmatprep.subr.mxu0 0.0
    %254 = vmatpush1.msra.mxu0 %v235
    %255 = vmatprep.subr.mxu0 0.0
    %256 = vmatpush1.msra.mxu0 %v236
    %257 = vmatprep.subr.mxu0 0.0
    %258 = vmatpush1.msra.mxu0 %v237
    %259 = vmatprep.subr.mxu0 0.0
    %260 = vmatpush1.msra.mxu0 %v238
    %261 = vmatprep.subr.mxu0 0.0
    %262 = vmatpush1.msra.mxu0 %v239
    %263 = vmatprep.subr.mxu0 0.0
    %264 = vmatpush1.msra.mxu0 %v240
    %265 = vmatprep.subr.mxu0 0.0
    %266 = vmatpush1.msra.mxu0 %v241
    %267 = vmatprep.subr.mxu0 0.0
    %268 = vmatpush1.msra.mxu0 %v242
    %269 = vmatprep.subr.mxu0 0.0
    %270 = vmatpush1.msra.mxu0 %v243
    %271 = vmatprep.subr.mxu0 0.0
    %272 = vmatpush1.msra.mxu0 %v244
    %273 = vmatprep.subr.mxu0 0.0
    %274 = vmatpush1.msra.mxu0 %v245
    %275 = vmatprep.subr.mxu0 0.0
    %276 = vmatpush1.msra.mxu0 %v246
    %277 = vmatprep.subr.mxu0 0.0
    %278 = vmatpush1.msra.mxu0 %v247
    %279 = vmatprep.subr.mxu0 0.0
    %280 = vmatpush1.msra.mxu0 %v248
    %281 = vmatprep.subr.mxu0 0.0
    %282 = vmatpush1.msra.mxu0 0.0
    %283 = vmatprep.subr.mxu0 0.0
    %284 = vmatpush1.msra.mxu0 0.0
    %285 = vmatprep.subr.mxu0 0.0
    %286 = vmatpush1.msra.mxu0 0.0
    %287 = vmatprep.subr.mxu0 0.0
    %288 = vmatpush1.msra.mxu0 0.0
    %289 = vmatprep.subr.mxu0 0.0
    %290 = vmatpush1.msra.mxu0 0.0
    %291 = vmatprep.subr.mxu0 0.0
    %292 = vmatpush1.msra.mxu0 0.0
    %293 = vmatprep.subr.mxu0 0.0
    %294 = vmatpush1.msra.mxu0 0.0
    %295 = vmatprep.subr.mxu0 0.0
    %296 = vmatpush1.msra.mxu0 0.0
    %297 = vmatprep.subr.mxu0 0.0
    %298 = vmatpush1.msra.mxu0 0.0
    %299 = vmatprep.subr.mxu0 0.0
    %300 = vmatpush1.msra.mxu0 0.0
    %301 = vmatprep.subr.mxu0 0.0
    %302 = vmatpush1.msra.mxu0 0.0
    %303 = vmatprep.subr.mxu0 0.0
    %304 = vmatpush1.msra.mxu0 0.0
    %305 = vmatprep.subr.mxu0 0.0
    %306 = vmatpush1.msra.mxu0 0.0
    %307 = vmatprep.subr.mxu0 0.0
    %308 = vmatpush1.msra.mxu0 0.0
    %309 = vmatprep.subr.mxu0 0.0
    %310 = vmatpush1.msra.mxu0 0.0
    %311 = vmatprep.subr.mxu0 0.0
    %312 = vmatpush1.msra.mxu0 0.0
    %313 = vmatprep.mubr.f32.mxu0 0.0
    %314 = vmatmul.mubr.f32.gmra.mrb[0].mxu0 %v232
    %v315 = vpop.f32.mrb[0].mxu0
    %v316 = vadd.f32 0.0, %v315
    %v317 = vpop.f32.mrb[0].mxu0
    %318 = vdwg.mxu0
    %v319 = vrot.slane %v316, 4
    %v320 = vadd.f32 %v316, %v319
    %v321 = vrot.slane %v320, 2
    %v322 = vadd.f32 %v320, %v321
    %v323 = vrot.slane %v322, 1
    %v324 = vadd.f32 %v322, %v323
    %v325 = vmul.f32 %v324, %v202
    %v326 = vmul.f32 %v316, %v316
    %v327 = vrot.slane %v326, 4
    %v328 = vadd.f32 %v326, %v327
    %v329 = vrot.slane %v328, 2
    %v330 = vadd.f32 %v328, %v329
    %v331 = vrot.slane %v330, 1
    %v332 = vadd.f32 %v330, %v331
    %v333 = vmul.f32 %v332, %v202
    %v334 = vmul.f32 %v325, %v325
    %v335 = vsub.f32 %v333, %v334
    %v336 = vadd.f32 %v335, 1e-05
    %v337 = vrsqrt.pop %v336
    %v338 = vmul.f32 %v103, %v337
    %v339 = vmul.f32 %v325, %v338
    %v341 = vrot.slane %v339, 7
    %v343 = vsub.f32 %v103, %v341
    %v344 = vlaneseq
    %v345 = vshrl.u32 %v344, 7
    %v346 = vsub.s32 2, %v345
    %v347 = vrot.slane %v338, %v346
    %v348 = vmul.f32 %v316, %v347
    %v349 = vlaneseq
    %v350 = vshrl.u32 %v349, 7
    %v351 = vsub.s32 3, %v350
    %v352 = vrot.slane %v343, %v351
    %v353 = vadd.f32 %v348, %v352
    %v354 = vmax.f32 %v353, 0.0
    %v355 = vld [vmem:[#allocation7] sm:$0xff]
    %v356 = vld [vmem:[#allocation7 + $0x8] sm:$0xff]
    %v357 = vld [vmem:[#allocation7 + $0x10] sm:$0xff]
    %v358 = vld [vmem:[#allocation7 + $0x18] sm:$0xff]
    %v359 = vld [vmem:[#allocation7 + $0x20] sm:$0xff]
    %v360 = vld [vmem:[#allocation7 + $0x28] sm:$0xff]
    %v361 = vld [vmem:[#allocation7 + $0x30] sm:$0xff]
    %v362 = vld [vmem:[#allocation7 + $0x38] sm:$0xff]
    %v363 = vld [vmem:[#allocation7 + $0x40] sm:$0xff]
    %v364 = vld [vmem:[#allocation7 + $0x48] sm:$0xff]
    %v365 = vld [vmem:[#allocation7 + $0x50] sm:$0xff]
    %v366 = vld [vmem:[#allocation7 + $0x58] sm:$0xff]
    %v367 = vld [vmem:[#allocation7 + $0x60] sm:$0xff]
    %v368 = vld [vmem:[#allocation7 + $0x68] sm:$0xff]
    %v369 = vld [vmem:[#allocation7 + $0x70] sm:$0xff]
    %v370 = vld [vmem:[#allocation7 + $0x78] sm:$0xff]
    %371 = vmatprep.subr.mxu0 0.0
    %372 = vmatpush1.msra.mxu0 %v355
    %373 = vmatprep.subr.mxu0 0.0
    %374 = vmatpush1.msra.mxu0 %v356
    %375 = vmatprep.subr.mxu0 0.0
    %376 = vmatpush1.msra.mxu0 %v357
    %377 = vmatprep.subr.mxu0 0.0
    %378 = vmatpush1.msra.mxu0 %v358
    %379 = vmatprep.subr.mxu0 0.0
    %380 = vmatpush1.msra.mxu0 %v359
    %381 = vmatprep.subr.mxu0 0.0
    %382 = vmatpush1.msra.mxu0 %v360
    %383 = vmatprep.subr.mxu0 0.0
    %384 = vmatpush1.msra.mxu0 %v361
    %385 = vmatprep.subr.mxu0 0.0
    %386 = vmatpush1.msra.mxu0 %v362
    %387 = vmatprep.subr.mxu0 0.0
    %388 = vmatpush1.msra.mxu0 %v363
    %389 = vmatprep.subr.mxu0 0.0
    %390 = vmatpush1.msra.mxu0 %v364
    %391 = vmatprep.subr.mxu0 0.0
    %392 = vmatpush1.msra.mxu0 %v365
    %393 = vmatprep.subr.mxu0 0.0
    %394 = vmatpush1.msra.mxu0 %v366
    %395 = vmatprep.subr.mxu0 0.0
    %396 = vmatpush1.msra.mxu0 %v367
    %397 = vmatprep.subr.mxu0 0.0
    %398 = vmatpush1.msra.mxu0 %v368
    %399 = vmatprep.subr.mxu0 0.0
    %400 = vmatpush1.msra.mxu0 %v369
    %401 = vmatprep.subr.mxu0 0.0
    %402 = vmatpush1.msra.mxu0 %v370
    %403 = vmatprep.subr.mxu0 0.0
    %404 = vmatpush1.msra.mxu0 0.0
    %405 = vmatprep.subr.mxu0 0.0
    %406 = vmatpush1.msra.mxu0 0.0
    %407 = vmatprep.subr.mxu0 0.0
    %408 = vmatpush1.msra.mxu0 0.0
    %409 = vmatprep.subr.mxu0 0.0
    %410 = vmatpush1.msra.mxu0 0.0
    %411 = vmatprep.subr.mxu0 0.0
    %412 = vmatpush1.msra.mxu0 0.0
    %413 = vmatprep.subr.mxu0 0.0
    %414 = vmatpush1.msra.mxu0 0.0
    %415 = vmatprep.subr.mxu0 0.0
    %416 = vmatpush1.msra.mxu0 0.0
    %417 = vmatprep.subr.mxu0 0.0
    %418 = vmatpush1.msra.mxu0 0.0
    %419 = vmatprep.subr.mxu0 0.0
    %420 = vmatpush1.msra.mxu0 0.0
    %421 = vmatprep.subr.mxu0 0.0
    %422 = vmatpush1.msra.mxu0 0.0
    %423 = vmatprep.subr.mxu0 0.0
    %424 = vmatpush1.msra.mxu0 0.0
    %425 = vmatprep.subr.mxu0 0.0
    %426 = vmatpush1.msra.mxu0 0.0
    %427 = vmatprep.subr.mxu0 0.0
    %428 = vmatpush1.msra.mxu0 0.0
    %429 = vmatprep.subr.mxu0 0.0
    %430 = vmatpush1.msra.mxu0 0.0
    %431 = vmatprep.subr.mxu0 0.0
    %432 = vmatpush1.msra.mxu0 0.0
    %433 = vmatprep.subr.mxu0 0.0
    %434 = vmatpush1.msra.mxu0 0.0
    %435 = vmatprep.mubr.f32.mxu0 0.0
    %436 = vmatmul.mubr.f32.gmra.mrb[0].mxu0 %v354
    %v437 = vpop.f32.mrb[0].mxu0
    %v438 = vadd.f32 0.0, %v437
    %v439 = vpop.f32.mrb[0].mxu0
    %440 = vdwg.mxu0
    %v441 = vrot.slane %v438, 4
    %v442 = vadd.f32 %v438, %v441
    %v443 = vrot.slane %v442, 2
    %v444 = vadd.f32 %v442, %v443
    %v445 = vrot.slane %v444, 1
    %v446 = vadd.f32 %v444, %v445
    %v447 = vmul.f32 %v446, %v202
    %v448 = vmul.f32 %v438, %v438
    %v449 = vrot.slane %v448, 4
    %v450 = vadd.f32 %v448, %v449
    %v451 = vrot.slane %v450, 2
    %v452 = vadd.f32 %v450, %v451
    %v453 = vrot.slane %v452, 1
    %v454 = vadd.f32 %v452, %v453
    %v455 = vmul.f32 %v454, %v202
    %v456 = vmul.f32 %v447, %v447
    %v457 = vsub.f32 %v455, %v456
    %v458 = vadd.f32 %v457, 1e-05
    %v459 = vrsqrt.pop %v458
    %v460 = vmul.f32 %v103, %v459
    %v461 = vmul.f32 %v447, %v460
    %v463 = vrot.slane %v461, 7
    %v465 = vsub.f32 %v103, %v463
    %v466 = vlaneseq
    %v467 = vshrl.u32 %v466, 7
    %v468 = vsub.s32 4, %v467
    %v469 = vrot.slane %v460, %v468
    %v470 = vmul.f32 %v438, %v469
    %v471 = vlaneseq
    %v472 = vshrl.u32 %v471, 7
    %v473 = vsub.s32 5, %v472
    %v474 = vrot.slane %v465, %v473
    %v475 = vadd.f32 %v470, %v474
    %v476 = vmax.f32 %v475, 0.0
    %v477 = vld [vmem:[#allocation9] sm:$0xff]
    %v478 = vld [vmem:[#allocation9 + $0x8] sm:$0xff]
    %v479 = vld [vmem:[#allocation9 + $0x10] sm:$0xff]
    %v480 = vld [vmem:[#allocation9 + $0x18] sm:$0xff]
    %v481 = vld [vmem:[#allocation9 + $0x20] sm:$0xff]
    %v482 = vld [vmem:[#allocation9 + $0x28] sm:$0xff]
    %v483 = vld [vmem:[#allocation9 + $0x30] sm:$0xff]
    %v484 = vld [vmem:[#allocation9 + $0x38] sm:$0xff]
    %v485 = vld [vmem:[#allocation9 + $0x40] sm:$0xff]
    %v486 = vld [vmem:[#allocation9 + $0x48] sm:$0xff]
    %v487 = vld [vmem:[#allocation9 + $0x50] sm:$0xff]
    %v488 = vld [vmem:[#allocation9 + $0x58] sm:$0xff]
    %v489 = vld [vmem:[#allocation9 + $0x60] sm:$0xff]
    %v490 = vld [vmem:[#allocation9 + $0x68] sm:$0xff]
    %v491 = vld [vmem:[#allocation9 + $0x70] sm:$0xff]
    %v492 = vld [vmem:[#allocation9 + $0x78] sm:$0xff]
    %v493 = vlaneseq
    %v494 = vshrl.u32 %v493, 7
    %v495 = vsub.s32 6, %v494
    %v496 = vrot.slane %v103, %v495
    %497 = vmatprep.subr.mxu0 0.0
    %498 = vmatpush1.msra.mxu0 %v477
    %499 = vmatprep.subr.mxu0 0.0
    %500 = vmatpush1.msra.mxu0 %v478
    %501 = vmatprep.subr.mxu0 0.0
    %502 = vmatpush1.msra.mxu0 %v479
    %503 = vmatprep.subr.mxu0 0.0
    %504 = vmatpush1.msra.mxu0 %v480
    %505 = vmatprep.subr.mxu0 0.0
    %506 = vmatpush1.msra.mxu0 %v481
    %507 = vmatprep.subr.mxu0 0.0
    %508 = vmatpush1.msra.mxu0 %v482
    %509 = vmatprep.subr.mxu0 0.0
    %510 = vmatpush1.msra.mxu0 %v483
    %511 = vmatprep.subr.mxu0 0.0
    %512 = vmatpush1.msra.mxu0 %v484
    %513 = vmatprep.subr.mxu0 0.0
    %514 = vmatpush1.msra.mxu0 %v485
    %515 = vmatprep.subr.mxu0 0.0
    %516 = vmatpush1.msra.mxu0 %v486
    %517 = vmatprep.subr.mxu0 0.0
    %518 = vmatpush1.msra.mxu0 %v487
    %519 = vmatprep.subr.mxu0 0.0
    %520 = vmatpush1.msra.mxu0 %v488
    %521 = vmatprep.subr.mxu0 0.0
    %522 = vmatpush1.msra.mxu0 %v489
    %523 = vmatprep.subr.mxu0 0.0
    %524 = vmatpush1.msra.mxu0 %v490
    %525 = vmatprep.subr.mxu0 0.0
    %526 = vmatpush1.msra.mxu0 %v491
    %527 = vmatprep.subr.mxu0 0.0
    %528 = vmatpush1.msra.mxu0 %v492
    %529 = vmatprep.subr.mxu0 0.0
    %530 = vmatpush1.msra.mxu0 0.0
    %531 = vmatprep.subr.mxu0 0.0
    %532 = vmatpush1.msra.mxu0 0.0
    %533 = vmatprep.subr.mxu0 0.0
    %534 = vmatpush1.msra.mxu0 0.0
    %535 = vmatprep.subr.mxu0 0.0
    %536 = vmatpush1.msra.mxu0 0.0
    %537 = vmatprep.subr.mxu0 0.0
    %538 = vmatpush1.msra.mxu0 0.0
    %539 = vmatprep.subr.mxu0 0.0
    %540 = vmatpush1.msra.mxu0 0.0
    %541 = vmatprep.subr.mxu0 0.0
    %542 = vmatpush1.msra.mxu0 0.0
    %543 = vmatprep.subr.mxu0 0.0
    %544 = vmatpush1.msra.mxu0 0.0
    %545 = vmatprep.subr.mxu0 0.0
    %546 = vmatpush1.msra.mxu0 0.0
    %547 = vmatprep.subr.mxu0 0.0
    %548 = vmatpush1.msra.mxu0 0.0
    %549 = vmatprep.subr.mxu0 0.0
    %550 = vmatpush1.msra.mxu0 0.0
    %551 = vmatprep.subr.mxu0 0.0
    %552 = vmatpush1.msra.mxu0 0.0
    %553 = vmatprep.subr.mxu0 0.0
    %554 = vmatpush1.msra.mxu0 0.0
    %555 = vmatprep.subr.mxu0 0.0
    %556 = vmatpush1.msra.mxu0 0.0
    %557 = vmatprep.subr.mxu0 0.0
    %558 = vmatpush1.msra.mxu0 0.0
    %559 = vmatprep.subr.mxu0 0.0
    %560 = vmatpush1.msra.mxu0 0.0
    %561 = vmatprep.mubr.f32.mxu0 0.0
    %562 = vmatmul.mubr.f32.gmra.mrb[0].mxu0 %v476
    %v563 = vpop.f32.mrb[0].mxu0
    %v564 = vadd.f32 %v496, %v563
    %v565 = vpop.f32.mrb[0].mxu0
    %566 = vdwg.mxu0
    %567 = vst [vmem:[%s6] sm:$0xff] %v564
    // Predicated region
    $region50: #{dqn_forward.1} parent=1 // pred_check
      _
    $region51: #{dqn_forward.1} parent=1 // pred_check_branch
      %569 = sbr.rel (0) target = $region53
    $region52: #{dqn_forward.1} parent=1 // pred_region
      _
    $region53: #{dqn_forward.1} parent=1 // pred_fallthru
      _
    // Predicated region
    $region54: #{dqn_forward.1} parent=1 // pred_check
      _
    $region55: #{dqn_forward.1} parent=1 // pred_check_branch
      %571 = sbr.rel (0) target = $region57
    $region56: #{dqn_forward.1} parent=1 // pred_region
      _
    $region57: #{dqn_forward.1} parent=1 // pred_fallthru
      _
    %572 = vsyncpa [#allocation3], 1
    %573 = vsyncpa [#allocation5], 1
    %574 = vsyncpa [#allocation8], 1
    %575 = vsyncpa [#allocation11], 1

</llo_original>
